<compile_context>
chip_gen: v5e
topology: v5e:2x2
jax: 0.10.0
libtpu: 0.0.40
codegen_flags: <defaults>
</compile_context>

<pallas_src>
import jax
import jax.numpy as jnp
from jax import lax
from jax.experimental import pallas as pl
from jax.experimental.pallas import tpu as pltpu
import numpy as np


def lstm_fused_kernel(a2d_ref, l2d_ref, w_ia_t_ref, w_il_t_ref, b_ref,
                      w_hh_t_ref, fc_w_ref, fc_b_ref, out_ref, gates_ref):
    """Fused input projection + serial LSTM recurrence + fc + 2-way softmax.

    a2d_ref:    (seq*bs, A)        f32  actions, flattened over (seq, bs)
    l2d_ref:    (seq*bs, L)        f32  latents,  flattened over (seq, bs)
    w_ia_t_ref: (A, 4H)            f32  W_ih[:, :A]^T
    w_il_t_ref: (L, 4H)            f32  W_ih[:, A:]^T
    b_ref:      (1, 4H)            f32  b_ih + b_hh
    w_hh_t_ref: (H, 4H)            f32  W_hh^T
    fc_w_ref:   (seq, 2, bs, H)    f32  fc rows pre-broadcast over batch
    fc_b_ref:   (1, 2)             f32
    out_ref:    (bs, 2)            f32
    gates_ref:  (seq*bs, 4H)       f32  VMEM scratch for gate pre-activations
    """
    seq_len = fc_w_ref.shape[0]
    bs = fc_w_ref.shape[2]
    H = w_hh_t_ref.shape[0]
    G = 4 * H

    # ---- Fused input projection: one-time MXU work, OFF the serial path. ----
    gin = (jnp.dot(a2d_ref[...], w_ia_t_ref[...],
                   preferred_element_type=jnp.float32)
           + jnp.dot(l2d_ref[...], w_il_t_ref[...],
                     preferred_element_type=jnp.float32)
           + b_ref[...])                                        # (seq*bs, 4H)
    gates_ref[...] = gin

    # Hoist the recurrent weight load out of the serial loop.
    w_hh_t = w_hh_t_ref[...]                                    # (H, 4H)

    # sigmoid(x) = 0.5*(1 + tanh(x/2)): pre-scale i/f/o lanes by 0.5 (g lanes
    # by 1.0) so a SINGLE full-width tanh serves all four gate blocks.
    lane = lax.broadcasted_iota(jnp.int32, (bs, G), 1)
    pre_scale = jnp.where((lane >= 2 * H) & (lane < 3 * H),
                          jnp.float32(1.0), jnp.float32(0.5))   # (bs, 4H)

    h0 = jnp.zeros((bs, H), jnp.float32)
    c0 = jnp.zeros((bs, H), jnp.float32)
    a0_init = jnp.zeros((bs, H), jnp.float32)                   # fc acc, output 0
    a1_init = jnp.zeros((bs, H), jnp.float32)                   # fc acc, output 1

    def body(t, carry):
        h, c, a0, a1 = carry
        # Only the recurrent matmul remains on the serial critical path.
        row = pl.multiple_of(t * bs, bs)
        gates = gates_ref[pl.ds(row, bs), :] + jnp.dot(
            h, w_hh_t, preferred_element_type=jnp.float32)      # (bs, 4H)
        # One full-width EUP tanh; sigmoid lanes recovered on the VPU.
        t_all = jnp.tanh(gates * pre_scale)
        s_all = 0.5 * (t_all + 1.0)
        i_g = s_all[:, 0 * H:1 * H]
        f_g = s_all[:, 1 * H:2 * H]
        g_g = t_all[:, 2 * H:3 * H]
        o_g = s_all[:, 3 * H:4 * H]
        c_new = f_g * c + i_g * g_g
        h_new = o_g * jnp.tanh(c_new)
        # fc over the flattened (bs, seq*H) tensor decomposes into per-timestep
        # lane-dense VPU FMAs; fc weights are pre-broadcast -> no per-step
        # sublane broadcasts inside the unrolled loop.
        fw = fc_w_ref[t]                                        # (2, bs, H)
        a0_new = a0 + h_new * fw[0]
        a1_new = a1 + h_new * fw[1]
        return h_new, c_new, a0_new, a1_new

    _, _, a0, a1 = lax.fori_loop(0, seq_len, body,
                                 (h0, c0, a0_init, a1_init), unroll=True)

    # ---- One-time epilogue: lane reductions + 2-way softmax, single store. ----
    fb = fc_b_ref[...]                                          # (1, 2)
    z0 = jnp.sum(a0, axis=-1, keepdims=True) + fb[:, 0:1]       # (bs, 1)
    z1 = jnp.sum(a1, axis=-1, keepdims=True) + fb[:, 1:2]       # (bs, 1)
    p0 = jax.nn.sigmoid(z0 - z1)       # exact 2-way softmax: e0/(e0+e1)
    p1 = 1.0 - p0
    col = lax.broadcasted_iota(jnp.int32, (bs, 2), 1)
    out_ref[...] = jnp.where(col == 0, p0, p1)                  # one store


def preprocess_params(params, seq_len, bs, actions_dim):
    """One-time parameter preprocessing (hoisted out of the per-call path)."""
    w_ih, w_hh = params["w_ih"], params["w_hh"]                 # (4H, D), (4H, H)
    H = w_hh.shape[1]
    fc_w, fc_b = params["fc_w"], params["fc_b"]                 # (2, seq*H), (2,)
    n_out = fc_w.shape[0]
    assert n_out == 2, "module fc is Linear(seq*H, 2)"

    w_ia_t = jnp.transpose(w_ih[:, :actions_dim])               # (A, 4H)
    w_il_t = jnp.transpose(w_ih[:, actions_dim:])               # (L, 4H)
    b = (params["b_ih"] + params["b_hh"]).reshape(1, 4 * H)     # (1, 4H)
    w_hh_t = jnp.transpose(w_hh)                                # (H, 4H)
    # flatten order of (bs, seq, H) is t*H + j  =>  (seq, n_out, H)
    fc_w_r = jnp.transpose(fc_w.reshape(n_out, seq_len, H), (1, 0, 2))
    # pre-broadcast over batch so the kernel loop needs no sublane broadcasts
    fc_w_b = jnp.broadcast_to(fc_w_r[:, :, None, :],
                              (seq_len, n_out, bs, H))          # (seq, 2, bs, H)
    fc_b_r = fc_b.reshape(1, n_out)                             # (1, 2)
    return {"w_ia_t": w_ia_t, "w_il_t": w_il_t, "b": b, "w_hh_t": w_hh_t,
            "fc_w_b": fc_w_b, "fc_b": fc_b_r}


def latent_lstm_forward(actions, latents_in, prep):
    """actions: (seq, bs, A) f32; latents_in: (seq, bs, L) f32 -> (bs, 2) f32."""
    seq_len, bs, A = actions.shape
    L = latents_in.shape[-1]
    H = prep["w_hh_t"].shape[0]
    n_out = prep["fc_b"].shape[-1]

    # Free metadata reshapes (contiguous leading-dim merge); the input
    # projection matmul itself happens inside the kernel.
    a2d = actions.reshape(seq_len * bs, A)
    l2d = latents_in.reshape(seq_len * bs, L)

    return pl.pallas_call(
        lstm_fused_kernel,
        out_shape=jax.ShapeDtypeStruct((bs, n_out), jnp.float32),
        in_specs=[pl.BlockSpec(memory_space=pltpu.MemorySpace.VMEM)] * 8,
        out_specs=pl.BlockSpec(memory_space=pltpu.MemorySpace.VMEM),
        scratch_shapes=[pltpu.VMEM((seq_len * bs, 4 * H), jnp.float32)],
    )(a2d, l2d, prep["w_ia_t"], prep["w_il_t"], prep["b"],
      prep["w_hh_t"], prep["fc_w_b"], prep["fc_b"])


def reference_forward(actions, latents_in, p):
    """Pure-JAX reference reproducing the PyTorch forward exactly."""
    bs = actions.shape[1]
    ins = jnp.concatenate([actions, latents_in], axis=-1)       # (seq, bs, D)
    H = p["w_hh"].shape[1]

    def step(carry, x_t):
        h, c = carry
        gates = x_t @ p["w_ih"].T + p["b_ih"] + h @ p["w_hh"].T + p["b_hh"]
        i = jax.nn.sigmoid(gates[:, :H])
        f = jax.nn.sigmoid(gates[:, H:2 * H])
        g = jnp.tanh(gates[:, 2 * H:3 * H])
        o = jax.nn.sigmoid(gates[:, 3 * H:])
        c = f * c + i * g
        h = o * jnp.tanh(c)
        return (h, c), h

    init = (jnp.zeros((bs, H), jnp.float32), jnp.zeros((bs, H), jnp.float32))
    _, outs = lax.scan(step, init, ins)                         # (seq, bs, H)
    flat = jnp.transpose(outs, (1, 0, 2)).reshape(bs, -1)       # (bs, seq*H)
    logits = flat @ p["fc_w"].T + p["fc_b"]
    return jax.nn.softmax(logits, axis=-1)


def init_params(key, latents, actions_dim, hiddens, seq_len, n_out=2):
    D = latents + actions_dim
    fc_in = seq_len * hiddens
    ks = jax.random.split(key, 6)
    k_lstm = 1.0 / np.sqrt(hiddens)
    k_fc = 1.0 / np.sqrt(fc_in)
    u = lambda k, shape, s: jax.random.uniform(k, shape, jnp.float32, -s, s)
    return {
        "w_ih": u(ks[0], (4 * hiddens, D), k_lstm),
        "w_hh": u(ks[1], (4 * hiddens, hiddens), k_lstm),
        "b_ih": u(ks[2], (4 * hiddens,), k_lstm),
        "b_hh": u(ks[3], (4 * hiddens,), k_lstm),
        "fc_w": u(ks[4], (n_out, fc_in), k_fc),
        "fc_b": u(ks[5], (n_out,), k_fc),
    }


if __name__ == "__main__":
    # Small shapes consistent with the module (fc input dim == seq_len * hiddens).
    # bs=8 fills all 8 f32 sublanes; 4H=128 makes the gate block lane-dense.
    SEQ, BS, LAT, ACT, HID = 8, 8, 16, 3, 32

    key = jax.random.PRNGKey(0)
    k_a, k_l, k_p = jax.random.split(key, 3)
    actions = jax.random.normal(k_a, (SEQ, BS, ACT), jnp.float32)
    latents_in = jax.random.normal(k_l, (SEQ, BS, LAT), jnp.float32)
    params = init_params(k_p, LAT, ACT, HID, SEQ)

    # One-time parameter preprocessing (not on the per-call path).
    prep = jax.tree_util.tree_map(jax.block_until_ready,
                                  preprocess_params(params, SEQ, BS, ACT))

    fwd = jax.jit(latent_lstm_forward)
    out = jax.block_until_ready(fwd(actions, latents_in, prep))

    ref = jax.block_until_ready(reference_forward(actions, latents_in, params))
    np.testing.assert_allclose(np.asarray(out), np.asarray(ref),
                               rtol=1e-5, atol=1e-5)
    assert out.shape == (BS, 2)
    print("KERNEL_OK")
</pallas_src>

<mosaic_0001>
module attributes {stable_mosaic.version = 11 : i64} {
  func.func @lstm_fused_kernel(%arg0: memref<64x3xf32, #tpu.memory_space<vmem>>, %arg1: memref<64x16xf32, #tpu.memory_space<vmem>>, %arg2: memref<3x128xf32, #tpu.memory_space<vmem>>, %arg3: memref<16x128xf32, #tpu.memory_space<vmem>>, %arg4: memref<1x128xf32, #tpu.memory_space<vmem>>, %arg5: memref<32x128xf32, #tpu.memory_space<vmem>>, %arg6: memref<8x2x8x32xf32, #tpu.memory_space<vmem>>, %arg7: memref<1x2xf32, #tpu.memory_space<vmem>>, %arg8: memref<8x2xf32, #tpu.memory_space<vmem>>, %arg9: memref<64x128xf32, #tpu.memory_space<vmem>>) attributes {dimension_semantics = [], scalar_prefetch = 0 : i64, scratch_operands = 1 : i64, tpu.core_type = #tpu.core_type<tc>} {
    %c0 = arith.constant 0 : index
    %c0_0 = arith.constant 0 : index
    %0 = vector.load %arg0[%c0, %c0_0] : memref<64x3xf32, #tpu.memory_space<vmem>>, vector<64x3xf32>
    %c0_1 = arith.constant 0 : index
    %c0_2 = arith.constant 0 : index
    %1 = vector.load %arg2[%c0_1, %c0_2] : memref<3x128xf32, #tpu.memory_space<vmem>>, vector<3x128xf32>
    %cst = arith.constant dense<0.000000e+00> : vector<64x128xf32>
    %2 = tpu.matmul %0, %1, %cst {dimension_numbers = #tpu.dot_dimension_numbers<[1], [0], [0], [1], [0, 0, 1, 1], [], []>} : vector<64x3xf32>, vector<3x128xf32>, vector<64x128xf32> -> vector<64x128xf32>
    %c0_3 = arith.constant 0 : index
    %c0_4 = arith.constant 0 : index
    %3 = vector.load %arg1[%c0_3, %c0_4] : memref<64x16xf32, #tpu.memory_space<vmem>>, vector<64x16xf32>
    %c0_5 = arith.constant 0 : index
    %c0_6 = arith.constant 0 : index
    %4 = vector.load %arg3[%c0_5, %c0_6] : memref<16x128xf32, #tpu.memory_space<vmem>>, vector<16x128xf32>
    %cst_7 = arith.constant dense<0.000000e+00> : vector<64x128xf32>
    %5 = tpu.matmul %3, %4, %cst_7 {dimension_numbers = #tpu.dot_dimension_numbers<[1], [0], [0], [1], [0, 0, 1, 1], [], []>} : vector<64x16xf32>, vector<16x128xf32>, vector<64x128xf32> -> vector<64x128xf32>
    %6 = arith.addf %2, %5 : vector<64x128xf32>
    %c0_8 = arith.constant 0 : index
    %c0_9 = arith.constant 0 : index
    %7 = vector.load %arg4[%c0_8, %c0_9] : memref<1x128xf32, #tpu.memory_space<vmem>>, vector<1x128xf32>
    %8 = vector.broadcast %7 : vector<1x128xf32> to vector<64x128xf32>
    %9 = arith.addf %6, %8 : vector<64x128xf32>
    %c0_10 = arith.constant 0 : index
    %c0_11 = arith.constant 0 : index
    %10 = vector.load %arg9[%c0_10, %c0_11] : memref<64x128xf32, #tpu.memory_space<vmem>>, vector<64x128xf32>
    tpu.vector_store %arg9[%c0_10, %c0_11], %9 {strides = array<i32>} : memref<64x128xf32, #tpu.memory_space<vmem>>, vector<64x128xf32>,
    %c0_12 = arith.constant 0 : index
    %c0_13 = arith.constant 0 : index
    %11 = vector.load %arg5[%c0_12, %c0_13] : memref<32x128xf32, #tpu.memory_space<vmem>>, vector<32x128xf32>
    %12 = tpu.iota {dimensions = array<i32: 1>} : vector<8x128xi32>
    %c64_i32 = arith.constant 64 : i32
    %13 = vector.broadcast %c64_i32 : i32 to vector<8x128xi32>
    %14 = arith.cmpi sge, %12, %13 : vector<8x128xi32>
    %c96_i32 = arith.constant 96 : i32
    %15 = vector.broadcast %c96_i32 : i32 to vector<8x128xi32>
    %16 = arith.cmpi slt, %12, %15 : vector<8x128xi32>
    %17 = arith.andi %14, %16 : vector<8x128xi1>
    %cst_14 = arith.constant 1.000000e+00 : f32
    %cst_15 = arith.constant 5.000000e-01 : f32
    %18 = vector.broadcast %cst_14 : f32 to vector<8x128xf32>
    %19 = vector.broadcast %cst_15 : f32 to vector<8x128xf32>
    %20 = arith.select %17, %18, %19 : vector<8x128xi1>, vector<8x128xf32>
    %cst_16 = arith.constant 0.000000e+00 : f32
    %21 = vector.broadcast %cst_16 : f32 to vector<8x32xf32>
    %cst_17 = arith.constant 0.000000e+00 : f32
    %22 = vector.broadcast %cst_17 : f32 to vector<8x32xf32>
    %cst_18 = arith.constant 0.000000e+00 : f32
    %23 = vector.broadcast %cst_18 : f32 to vector<8x32xf32>
    %cst_19 = arith.constant 0.000000e+00 : f32
    %24 = vector.broadcast %cst_19 : f32 to vector<8x32xf32>
    %c0_i32 = arith.constant 0 : i32
    %c8_i32 = arith.constant 8 : i32
    %25 = arith.muli %c0_i32, %c8_i32 : i32
    %26 = tpu.assume_multiple %25, 8 : i32
    %27 = arith.index_cast %26 : i32 to index
    %c0_20 = arith.constant 0 : index
    %28 = vector.load %arg9[%27, %c0_20] : memref<64x128xf32, #tpu.memory_space<vmem>>, vector<8x128xf32>
    %cst_21 = arith.constant dense<0.000000e+00> : vector<8x128xf32>
    %29 = tpu.matmul %21, %11, %cst_21 {dimension_numbers = #tpu.dot_dimension_numbers<[1], [0], [0], [1], [0, 0, 1, 1], [], []>} : vector<8x32xf32>, vector<32x128xf32>, vector<8x128xf32> -> vector<8x128xf32>
    %30 = arith.addf %28, %29 : vector<8x128xf32>
    %31 = arith.mulf %30, %20 : vector<8x128xf32>
    %32 = math.tanh %31 : vector<8x128xf32>
    %cst_22 = arith.constant 1.000000e+00 : f32
    %33 = vector.broadcast %cst_22 : f32 to vector<8x128xf32>
    %34 = arith.addf %32, %33 : vector<8x128xf32>
    %cst_23 = arith.constant 5.000000e-01 : f32
    %35 = vector.broadcast %cst_23 : f32 to vector<8x128xf32>
    %36 = arith.mulf %35, %34 : vector<8x128xf32>
    %37 = vector.extract_strided_slice %36 {offsets = [0, 0], sizes = [8, 32], strides = [1, 1]} : vector<8x128xf32> to vector<8x32xf32>
    %38 = vector.extract_strided_slice %36 {offsets = [0, 32], sizes = [8, 32], strides = [1, 1]} : vector<8x128xf32> to vector<8x32xf32>
    %39 = vector.extract_strided_slice %32 {offsets = [0, 64], sizes = [8, 32], strides = [1, 1]} : vector<8x128xf32> to vector<8x32xf32>
    %40 = vector.extract_strided_slice %36 {offsets = [0, 96], sizes = [8, 32], strides = [1, 1]} : vector<8x128xf32> to vector<8x32xf32>
    %41 = arith.mulf %38, %22 : vector<8x32xf32>
    %42 = arith.mulf %37, %39 : vector<8x32xf32>
    %43 = arith.addf %41, %42 : vector<8x32xf32>
    %44 = math.tanh %43 : vector<8x32xf32>
    %45 = arith.mulf %40, %44 : vector<8x32xf32>
    %46 = arith.index_cast %c0_i32 : i32 to index
    %c0_24 = arith.constant 0 : index
    %c0_25 = arith.constant 0 : index
    %c0_26 = arith.constant 0 : index
    %47 = vector.load %arg6[%46, %c0_24, %c0_25, %c0_26] : memref<8x2x8x32xf32, #tpu.memory_space<vmem>>, vector<1x2x8x32xf32>
    %48 = vector.shape_cast %47 : vector<1x2x8x32xf32> to vector<2x8x32xf32>
    %49 = vector.extract_strided_slice %48 {offsets = [0, 0, 0], sizes = [1, 8, 32], strides = [1, 1, 1]} : vector<2x8x32xf32> to vector<1x8x32xf32>
    %50 = vector.shape_cast %49 : vector<1x8x32xf32> to vector<8x32xf32>
    %51 = arith.mulf %45, %50 : vector<8x32xf32>
    %52 = arith.addf %23, %51 : vector<8x32xf32>
    %53 = vector.extract_strided_slice %48 {offsets = [1, 0, 0], sizes = [1, 8, 32], strides = [1, 1, 1]} : vector<2x8x32xf32> to vector<1x8x32xf32>
    %54 = vector.shape_cast %53 : vector<1x8x32xf32> to vector<8x32xf32>
    %55 = arith.mulf %45, %54 : vector<8x32xf32>
    %56 = arith.addf %24, %55 : vector<8x32xf32>
    %c1_i32 = arith.constant 1 : i32
    %c8_i32_27 = arith.constant 8 : i32
    %57 = arith.muli %c1_i32, %c8_i32_27 : i32
    %58 = tpu.assume_multiple %57, 8 : i32
    %59 = arith.index_cast %58 : i32 to index
    %c0_28 = arith.constant 0 : index
    %60 = vector.load %arg9[%59, %c0_28] : memref<64x128xf32, #tpu.memory_space<vmem>>, vector<8x128xf32>
    %cst_29 = arith.constant dense<0.000000e+00> : vector<8x128xf32>
    %61 = tpu.matmul %45, %11, %cst_29 {dimension_numbers = #tpu.dot_dimension_numbers<[1], [0], [0], [1], [0, 0, 1, 1], [], []>} : vector<8x32xf32>, vector<32x128xf32>, vector<8x128xf32> -> vector<8x128xf32>
    %62 = arith.addf %60, %61 : vector<8x128xf32>
    %63 = arith.mulf %62, %20 : vector<8x128xf32>
    %64 = math.tanh %63 : vector<8x128xf32>
    %cst_30 = arith.constant 1.000000e+00 : f32
    %65 = vector.broadcast %cst_30 : f32 to vector<8x128xf32>
    %66 = arith.addf %64, %65 : vector<8x128xf32>
    %cst_31 = arith.constant 5.000000e-01 : f32
    %67 = vector.broadcast %cst_31 : f32 to vector<8x128xf32>
    %68 = arith.mulf %67, %66 : vector<8x128xf32>
    %69 = vector.extract_strided_slice %68 {offsets = [0, 0], sizes = [8, 32], strides = [1, 1]} : vector<8x128xf32> to vector<8x32xf32>
    %70 = vector.extract_strided_slice %68 {offsets = [0, 32], sizes = [8, 32], strides = [1, 1]} : vector<8x128xf32> to vector<8x32xf32>
    %71 = vector.extract_strided_slice %64 {offsets = [0, 64], sizes = [8, 32], strides = [1, 1]} : vector<8x128xf32> to vector<8x32xf32>
    %72 = vector.extract_strided_slice %68 {offsets = [0, 96], sizes = [8, 32], strides = [1, 1]} : vector<8x128xf32> to vector<8x32xf32>
    %73 = arith.mulf %70, %43 : vector<8x32xf32>
    %74 = arith.mulf %69, %71 : vector<8x32xf32>
    %75 = arith.addf %73, %74 : vector<8x32xf32>
    %76 = math.tanh %75 : vector<8x32xf32>
    %77 = arith.mulf %72, %76 : vector<8x32xf32>
    %78 = arith.index_cast %c1_i32 : i32 to index
    %c0_32 = arith.constant 0 : index
    %c0_33 = arith.constant 0 : index
    %c0_34 = arith.constant 0 : index
    %79 = vector.load %arg6[%78, %c0_32, %c0_33, %c0_34] : memref<8x2x8x32xf32, #tpu.memory_space<vmem>>, vector<1x2x8x32xf32>
    %80 = vector.shape_cast %79 : vector<1x2x8x32xf32> to vector<2x8x32xf32>
    %81 = vector.extract_strided_slice %80 {offsets = [0, 0, 0], sizes = [1, 8, 32], strides = [1, 1, 1]} : vector<2x8x32xf32> to vector<1x8x32xf32>
    %82 = vector.shape_cast %81 : vector<1x8x32xf32> to vector<8x32xf32>
    %83 = arith.mulf %77, %82 : vector<8x32xf32>
    %84 = arith.addf %52, %83 : vector<8x32xf32>
    %85 = vector.extract_strided_slice %80 {offsets = [1, 0, 0], sizes = [1, 8, 32], strides = [1, 1, 1]} : vector<2x8x32xf32> to vector<1x8x32xf32>
    %86 = vector.shape_cast %85 : vector<1x8x32xf32> to vector<8x32xf32>
    %87 = arith.mulf %77, %86 : vector<8x32xf32>
    %88 = arith.addf %56, %87 : vector<8x32xf32>
    %c2_i32 = arith.constant 2 : i32
    %c8_i32_35 = arith.constant 8 : i32
    %89 = arith.muli %c2_i32, %c8_i32_35 : i32
    %90 = tpu.assume_multiple %89, 8 : i32
    %91 = arith.index_cast %90 : i32 to index
    %c0_36 = arith.constant 0 : index
    %92 = vector.load %arg9[%91, %c0_36] : memref<64x128xf32, #tpu.memory_space<vmem>>, vector<8x128xf32>
    %cst_37 = arith.constant dense<0.000000e+00> : vector<8x128xf32>
    %93 = tpu.matmul %77, %11, %cst_37 {dimension_numbers = #tpu.dot_dimension_numbers<[1], [0], [0], [1], [0, 0, 1, 1], [], []>} : vector<8x32xf32>, vector<32x128xf32>, vector<8x128xf32> -> vector<8x128xf32>
    %94 = arith.addf %92, %93 : vector<8x128xf32>
    %95 = arith.mulf %94, %20 : vector<8x128xf32>
    %96 = math.tanh %95 : vector<8x128xf32>
    %cst_38 = arith.constant 1.000000e+00 : f32
    %97 = vector.broadcast %cst_38 : f32 to vector<8x128xf32>
    %98 = arith.addf %96, %97 : vector<8x128xf32>
    %cst_39 = arith.constant 5.000000e-01 : f32
    %99 = vector.broadcast %cst_39 : f32 to vector<8x128xf32>
    %100 = arith.mulf %99, %98 : vector<8x128xf32>
    %101 = vector.extract_strided_slice %100 {offsets = [0, 0], sizes = [8, 32], strides = [1, 1]} : vector<8x128xf32> to vector<8x32xf32>
    %102 = vector.extract_strided_slice %100 {offsets = [0, 32], sizes = [8, 32], strides = [1, 1]} : vector<8x128xf32> to vector<8x32xf32>
    %103 = vector.extract_strided_slice %96 {offsets = [0, 64], sizes = [8, 32], strides = [1, 1]} : vector<8x128xf32> to vector<8x32xf32>
    %104 = vector.extract_strided_slice %100 {offsets = [0, 96], sizes = [8, 32], strides = [1, 1]} : vector<8x128xf32> to vector<8x32xf32>
    %105 = arith.mulf %102, %75 : vector<8x32xf32>
    %106 = arith.mulf %101, %103 : vector<8x32xf32>
    %107 = arith.addf %105, %106 : vector<8x32xf32>
    %108 = math.tanh %107 : vector<8x32xf32>
    %109 = arith.mulf %104, %108 : vector<8x32xf32>
    %110 = arith.index_cast %c2_i32 : i32 to index
    %c0_40 = arith.constant 0 : index
    %c0_41 = arith.constant 0 : index
    %c0_42 = arith.constant 0 : index
    %111 = vector.load %arg6[%110, %c0_40, %c0_41, %c0_42] : memref<8x2x8x32xf32, #tpu.memory_space<vmem>>, vector<1x2x8x32xf32>
    %112 = vector.shape_cast %111 : vector<1x2x8x32xf32> to vector<2x8x32xf32>
    %113 = vector.extract_strided_slice %112 {offsets = [0, 0, 0], sizes = [1, 8, 32], strides = [1, 1, 1]} : vector<2x8x32xf32> to vector<1x8x32xf32>
    %114 = vector.shape_cast %113 : vector<1x8x32xf32> to vector<8x32xf32>
    %115 = arith.mulf %109, %114 : vector<8x32xf32>
    %116 = arith.addf %84, %115 : vector<8x32xf32>
    %117 = vector.extract_strided_slice %112 {offsets = [1, 0, 0], sizes = [1, 8, 32], strides = [1, 1, 1]} : vector<2x8x32xf32> to vector<1x8x32xf32>
    %118 = vector.shape_cast %117 : vector<1x8x32xf32> to vector<8x32xf32>
    %119 = arith.mulf %109, %118 : vector<8x32xf32>
    %120 = arith.addf %88, %119 : vector<8x32xf32>
    %c3_i32 = arith.constant 3 : i32
    %c8_i32_43 = arith.constant 8 : i32
    %121 = arith.muli %c3_i32, %c8_i32_43 : i32
    %122 = tpu.assume_multiple %121, 8 : i32
    %123 = arith.index_cast %122 : i32 to index
    %c0_44 = arith.constant 0 : index
    %124 = vector.load %arg9[%123, %c0_44] : memref<64x128xf32, #tpu.memory_space<vmem>>, vector<8x128xf32>
    %cst_45 = arith.constant dense<0.000000e+00> : vector<8x128xf32>
    %125 = tpu.matmul %109, %11, %cst_45 {dimension_numbers = #tpu.dot_dimension_numbers<[1], [0], [0], [1], [0, 0, 1, 1], [], []>} : vector<8x32xf32>, vector<32x128xf32>, vector<8x128xf32> -> vector<8x128xf32>
    %126 = arith.addf %124, %125 : vector<8x128xf32>
    %127 = arith.mulf %126, %20 : vector<8x128xf32>
    %128 = math.tanh %127 : vector<8x128xf32>
    %cst_46 = arith.constant 1.000000e+00 : f32
    %129 = vector.broadcast %cst_46 : f32 to vector<8x128xf32>
    %130 = arith.addf %128, %129 : vector<8x128xf32>
    %cst_47 = arith.constant 5.000000e-01 : f32
    %131 = vector.broadcast %cst_47 : f32 to vector<8x128xf32>
    %132 = arith.mulf %131, %130 : vector<8x128xf32>
    %133 = vector.extract_strided_slice %132 {offsets = [0, 0], sizes = [8, 32], strides = [1, 1]} : vector<8x128xf32> to vector<8x32xf32>
    %134 = vector.extract_strided_slice %132 {offsets = [0, 32], sizes = [8, 32], strides = [1, 1]} : vector<8x128xf32> to vector<8x32xf32>
    %135 = vector.extract_strided_slice %128 {offsets = [0, 64], sizes = [8, 32], strides = [1, 1]} : vector<8x128xf32> to vector<8x32xf32>
    %136 = vector.extract_strided_slice %132 {offsets = [0, 96], sizes = [8, 32], strides = [1, 1]} : vector<8x128xf32> to vector<8x32xf32>
    %137 = arith.mulf %134, %107 : vector<8x32xf32>
    %138 = arith.mulf %133, %135 : vector<8x32xf32>
    %139 = arith.addf %137, %138 : vector<8x32xf32>
    %140 = math.tanh %139 : vector<8x32xf32>
    %141 = arith.mulf %136, %140 : vector<8x32xf32>
    %142 = arith.index_cast %c3_i32 : i32 to index
    %c0_48 = arith.constant 0 : index
    %c0_49 = arith.constant 0 : index
    %c0_50 = arith.constant 0 : index
    %143 = vector.load %arg6[%142, %c0_48, %c0_49, %c0_50] : memref<8x2x8x32xf32, #tpu.memory_space<vmem>>, vector<1x2x8x32xf32>
    %144 = vector.shape_cast %143 : vector<1x2x8x32xf32> to vector<2x8x32xf32>
    %145 = vector.extract_strided_slice %144 {offsets = [0, 0, 0], sizes = [1, 8, 32], strides = [1, 1, 1]} : vector<2x8x32xf32> to vector<1x8x32xf32>
    %146 = vector.shape_cast %145 : vector<1x8x32xf32> to vector<8x32xf32>
    %147 = arith.mulf %141, %146 : vector<8x32xf32>
    %148 = arith.addf %116, %147 : vector<8x32xf32>
    %149 = vector.extract_strided_slice %144 {offsets = [1, 0, 0], sizes = [1, 8, 32], strides = [1, 1, 1]} : vector<2x8x32xf32> to vector<1x8x32xf32>
    %150 = vector.shape_cast %149 : vector<1x8x32xf32> to vector<8x32xf32>
    %151 = arith.mulf %141, %150 : vector<8x32xf32>
    %152 = arith.addf %120, %151 : vector<8x32xf32>
    %c4_i32 = arith.constant 4 : i32
    %c8_i32_51 = arith.constant 8 : i32
    %153 = arith.muli %c4_i32, %c8_i32_51 : i32
    %154 = tpu.assume_multiple %153, 8 : i32
    %155 = arith.index_cast %154 : i32 to index
    %c0_52 = arith.constant 0 : index
    %156 = vector.load %arg9[%155, %c0_52] : memref<64x128xf32, #tpu.memory_space<vmem>>, vector<8x128xf32>
    %cst_53 = arith.constant dense<0.000000e+00> : vector<8x128xf32>
    %157 = tpu.matmul %141, %11, %cst_53 {dimension_numbers = #tpu.dot_dimension_numbers<[1], [0], [0], [1], [0, 0, 1, 1], [], []>} : vector<8x32xf32>, vector<32x128xf32>, vector<8x128xf32> -> vector<8x128xf32>
    %158 = arith.addf %156, %157 : vector<8x128xf32>
    %159 = arith.mulf %158, %20 : vector<8x128xf32>
    %160 = math.tanh %159 : vector<8x128xf32>
    %cst_54 = arith.constant 1.000000e+00 : f32
    %161 = vector.broadcast %cst_54 : f32 to vector<8x128xf32>
    %162 = arith.addf %160, %161 : vector<8x128xf32>
    %cst_55 = arith.constant 5.000000e-01 : f32
    %163 = vector.broadcast %cst_55 : f32 to vector<8x128xf32>
    %164 = arith.mulf %163, %162 : vector<8x128xf32>
    %165 = vector.extract_strided_slice %164 {offsets = [0, 0], sizes = [8, 32], strides = [1, 1]} : vector<8x128xf32> to vector<8x32xf32>
    %166 = vector.extract_strided_slice %164 {offsets = [0, 32], sizes = [8, 32], strides = [1, 1]} : vector<8x128xf32> to vector<8x32xf32>
    %167 = vector.extract_strided_slice %160 {offsets = [0, 64], sizes = [8, 32], strides = [1, 1]} : vector<8x128xf32> to vector<8x32xf32>
    %168 = vector.extract_strided_slice %164 {offsets = [0, 96], sizes = [8, 32], strides = [1, 1]} : vector<8x128xf32> to vector<8x32xf32>
    %169 = arith.mulf %166, %139 : vector<8x32xf32>
    %170 = arith.mulf %165, %167 : vector<8x32xf32>
    %171 = arith.addf %169, %170 : vector<8x32xf32>
    %172 = math.tanh %171 : vector<8x32xf32>
    %173 = arith.mulf %168, %172 : vector<8x32xf32>
    %174 = arith.index_cast %c4_i32 : i32 to index
    %c0_56 = arith.constant 0 : index
    %c0_57 = arith.constant 0 : index
    %c0_58 = arith.constant 0 : index
    %175 = vector.load %arg6[%174, %c0_56, %c0_57, %c0_58] : memref<8x2x8x32xf32, #tpu.memory_space<vmem>>, vector<1x2x8x32xf32>
    %176 = vector.shape_cast %175 : vector<1x2x8x32xf32> to vector<2x8x32xf32>
    %177 = vector.extract_strided_slice %176 {offsets = [0, 0, 0], sizes = [1, 8, 32], strides = [1, 1, 1]} : vector<2x8x32xf32> to vector<1x8x32xf32>
    %178 = vector.shape_cast %177 : vector<1x8x32xf32> to vector<8x32xf32>
    %179 = arith.mulf %173, %178 : vector<8x32xf32>
    %180 = arith.addf %148, %179 : vector<8x32xf32>
    %181 = vector.extract_strided_slice %176 {offsets = [1, 0, 0], sizes = [1, 8, 32], strides = [1, 1, 1]} : vector<2x8x32xf32> to vector<1x8x32xf32>
    %182 = vector.shape_cast %181 : vector<1x8x32xf32> to vector<8x32xf32>
    %183 = arith.mulf %173, %182 : vector<8x32xf32>
    %184 = arith.addf %152, %183 : vector<8x32xf32>
    %c5_i32 = arith.constant 5 : i32
    %c8_i32_59 = arith.constant 8 : i32
    %185 = arith.muli %c5_i32, %c8_i32_59 : i32
    %186 = tpu.assume_multiple %185, 8 : i32
    %187 = arith.index_cast %186 : i32 to index
    %c0_60 = arith.constant 0 : index
    %188 = vector.load %arg9[%187, %c0_60] : memref<64x128xf32, #tpu.memory_space<vmem>>, vector<8x128xf32>
    %cst_61 = arith.constant dense<0.000000e+00> : vector<8x128xf32>
    %189 = tpu.matmul %173, %11, %cst_61 {dimension_numbers = #tpu.dot_dimension_numbers<[1], [0], [0], [1], [0, 0, 1, 1], [], []>} : vector<8x32xf32>, vector<32x128xf32>, vector<8x128xf32> -> vector<8x128xf32>
    %190 = arith.addf %188, %189 : vector<8x128xf32>
    %191 = arith.mulf %190, %20 : vector<8x128xf32>
    %192 = math.tanh %191 : vector<8x128xf32>
    %cst_62 = arith.constant 1.000000e+00 : f32
    %193 = vector.broadcast %cst_62 : f32 to vector<8x128xf32>
    %194 = arith.addf %192, %193 : vector<8x128xf32>
    %cst_63 = arith.constant 5.000000e-01 : f32
    %195 = vector.broadcast %cst_63 : f32 to vector<8x128xf32>
    %196 = arith.mulf %195, %194 : vector<8x128xf32>
    %197 = vector.extract_strided_slice %196 {offsets = [0, 0], sizes = [8, 32], strides = [1, 1]} : vector<8x128xf32> to vector<8x32xf32>
    %198 = vector.extract_strided_slice %196 {offsets = [0, 32], sizes = [8, 32], strides = [1, 1]} : vector<8x128xf32> to vector<8x32xf32>
    %199 = vector.extract_strided_slice %192 {offsets = [0, 64], sizes = [8, 32], strides = [1, 1]} : vector<8x128xf32> to vector<8x32xf32>
    %200 = vector.extract_strided_slice %196 {offsets = [0, 96], sizes = [8, 32], strides = [1, 1]} : vector<8x128xf32> to vector<8x32xf32>
    %201 = arith.mulf %198, %171 : vector<8x32xf32>
    %202 = arith.mulf %197, %199 : vector<8x32xf32>
    %203 = arith.addf %201, %202 : vector<8x32xf32>
    %204 = math.tanh %203 : vector<8x32xf32>
    %205 = arith.mulf %200, %204 : vector<8x32xf32>
    %206 = arith.index_cast %c5_i32 : i32 to index
    %c0_64 = arith.constant 0 : index
    %c0_65 = arith.constant 0 : index
    %c0_66 = arith.constant 0 : index
    %207 = vector.load %arg6[%206, %c0_64, %c0_65, %c0_66] : memref<8x2x8x32xf32, #tpu.memory_space<vmem>>, vector<1x2x8x32xf32>
    %208 = vector.shape_cast %207 : vector<1x2x8x32xf32> to vector<2x8x32xf32>
    %209 = vector.extract_strided_slice %208 {offsets = [0, 0, 0], sizes = [1, 8, 32], strides = [1, 1, 1]} : vector<2x8x32xf32> to vector<1x8x32xf32>
    %210 = vector.shape_cast %209 : vector<1x8x32xf32> to vector<8x32xf32>
    %211 = arith.mulf %205, %210 : vector<8x32xf32>
    %212 = arith.addf %180, %211 : vector<8x32xf32>
    %213 = vector.extract_strided_slice %208 {offsets = [1, 0, 0], sizes = [1, 8, 32], strides = [1, 1, 1]} : vector<2x8x32xf32> to vector<1x8x32xf32>
    %214 = vector.shape_cast %213 : vector<1x8x32xf32> to vector<8x32xf32>
    %215 = arith.mulf %205, %214 : vector<8x32xf32>
    %216 = arith.addf %184, %215 : vector<8x32xf32>
    %c6_i32 = arith.constant 6 : i32
    %c8_i32_67 = arith.constant 8 : i32
    %217 = arith.muli %c6_i32, %c8_i32_67 : i32
    %218 = tpu.assume_multiple %217, 8 : i32
    %219 = arith.index_cast %218 : i32 to index
    %c0_68 = arith.constant 0 : index
    %220 = vector.load %arg9[%219, %c0_68] : memref<64x128xf32, #tpu.memory_space<vmem>>, vector<8x128xf32>
    %cst_69 = arith.constant dense<0.000000e+00> : vector<8x128xf32>
    %221 = tpu.matmul %205, %11, %cst_69 {dimension_numbers = #tpu.dot_dimension_numbers<[1], [0], [0], [1], [0, 0, 1, 1], [], []>} : vector<8x32xf32>, vector<32x128xf32>, vector<8x128xf32> -> vector<8x128xf32>
    %222 = arith.addf %220, %221 : vector<8x128xf32>
    %223 = arith.mulf %222, %20 : vector<8x128xf32>
    %224 = math.tanh %223 : vector<8x128xf32>
    %cst_70 = arith.constant 1.000000e+00 : f32
    %225 = vector.broadcast %cst_70 : f32 to vector<8x128xf32>
    %226 = arith.addf %224, %225 : vector<8x128xf32>
    %cst_71 = arith.constant 5.000000e-01 : f32
    %227 = vector.broadcast %cst_71 : f32 to vector<8x128xf32>
    %228 = arith.mulf %227, %226 : vector<8x128xf32>
    %229 = vector.extract_strided_slice %228 {offsets = [0, 0], sizes = [8, 32], strides = [1, 1]} : vector<8x128xf32> to vector<8x32xf32>
    %230 = vector.extract_strided_slice %228 {offsets = [0, 32], sizes = [8, 32], strides = [1, 1]} : vector<8x128xf32> to vector<8x32xf32>
    %231 = vector.extract_strided_slice %224 {offsets = [0, 64], sizes = [8, 32], strides = [1, 1]} : vector<8x128xf32> to vector<8x32xf32>
    %232 = vector.extract_strided_slice %228 {offsets = [0, 96], sizes = [8, 32], strides = [1, 1]} : vector<8x128xf32> to vector<8x32xf32>
    %233 = arith.mulf %230, %203 : vector<8x32xf32>
    %234 = arith.mulf %229, %231 : vector<8x32xf32>
    %235 = arith.addf %233, %234 : vector<8x32xf32>
    %236 = math.tanh %235 : vector<8x32xf32>
    %237 = arith.mulf %232, %236 : vector<8x32xf32>
    %238 = arith.index_cast %c6_i32 : i32 to index
    %c0_72 = arith.constant 0 : index
    %c0_73 = arith.constant 0 : index
    %c0_74 = arith.constant 0 : index
    %239 = vector.load %arg6[%238, %c0_72, %c0_73, %c0_74] : memref<8x2x8x32xf32, #tpu.memory_space<vmem>>, vector<1x2x8x32xf32>
    %240 = vector.shape_cast %239 : vector<1x2x8x32xf32> to vector<2x8x32xf32>
    %241 = vector.extract_strided_slice %240 {offsets = [0, 0, 0], sizes = [1, 8, 32], strides = [1, 1, 1]} : vector<2x8x32xf32> to vector<1x8x32xf32>
    %242 = vector.shape_cast %241 : vector<1x8x32xf32> to vector<8x32xf32>
    %243 = arith.mulf %237, %242 : vector<8x32xf32>
    %244 = arith.addf %212, %243 : vector<8x32xf32>
    %245 = vector.extract_strided_slice %240 {offsets = [1, 0, 0], sizes = [1, 8, 32], strides = [1, 1, 1]} : vector<2x8x32xf32> to vector<1x8x32xf32>
    %246 = vector.shape_cast %245 : vector<1x8x32xf32> to vector<8x32xf32>
    %247 = arith.mulf %237, %246 : vector<8x32xf32>
    %248 = arith.addf %216, %247 : vector<8x32xf32>
    %c7_i32 = arith.constant 7 : i32
    %c8_i32_75 = arith.constant 8 : i32
    %249 = arith.muli %c7_i32, %c8_i32_75 : i32
    %250 = tpu.assume_multiple %249, 8 : i32
    %251 = arith.index_cast %250 : i32 to index
    %c0_76 = arith.constant 0 : index
    %252 = vector.load %arg9[%251, %c0_76] : memref<64x128xf32, #tpu.memory_space<vmem>>, vector<8x128xf32>
    %cst_77 = arith.constant dense<0.000000e+00> : vector<8x128xf32>
    %253 = tpu.matmul %237, %11, %cst_77 {dimension_numbers = #tpu.dot_dimension_numbers<[1], [0], [0], [1], [0, 0, 1, 1], [], []>} : vector<8x32xf32>, vector<32x128xf32>, vector<8x128xf32> -> vector<8x128xf32>
    %254 = arith.addf %252, %253 : vector<8x128xf32>
    %255 = arith.mulf %254, %20 : vector<8x128xf32>
    %256 = math.tanh %255 : vector<8x128xf32>
    %cst_78 = arith.constant 1.000000e+00 : f32
    %257 = vector.broadcast %cst_78 : f32 to vector<8x128xf32>
    %258 = arith.addf %256, %257 : vector<8x128xf32>
    %cst_79 = arith.constant 5.000000e-01 : f32
    %259 = vector.broadcast %cst_79 : f32 to vector<8x128xf32>
    %260 = arith.mulf %259, %258 : vector<8x128xf32>
    %261 = vector.extract_strided_slice %260 {offsets = [0, 0], sizes = [8, 32], strides = [1, 1]} : vector<8x128xf32> to vector<8x32xf32>
    %262 = vector.extract_strided_slice %260 {offsets = [0, 32], sizes = [8, 32], strides = [1, 1]} : vector<8x128xf32> to vector<8x32xf32>
    %263 = vector.extract_strided_slice %256 {offsets = [0, 64], sizes = [8, 32], strides = [1, 1]} : vector<8x128xf32> to vector<8x32xf32>
    %264 = vector.extract_strided_slice %260 {offsets = [0, 96], sizes = [8, 32], strides = [1, 1]} : vector<8x128xf32> to vector<8x32xf32>
    %265 = arith.mulf %262, %235 : vector<8x32xf32>
    %266 = arith.mulf %261, %263 : vector<8x32xf32>
    %267 = arith.addf %265, %266 : vector<8x32xf32>
    %268 = math.tanh %267 : vector<8x32xf32>
    %269 = arith.mulf %264, %268 : vector<8x32xf32>
    %270 = arith.index_cast %c7_i32 : i32 to index
    %c0_80 = arith.constant 0 : index
    %c0_81 = arith.constant 0 : index
    %c0_82 = arith.constant 0 : index
    %271 = vector.load %arg6[%270, %c0_80, %c0_81, %c0_82] : memref<8x2x8x32xf32, #tpu.memory_space<vmem>>, vector<1x2x8x32xf32>
    %272 = vector.shape_cast %271 : vector<1x2x8x32xf32> to vector<2x8x32xf32>
    %273 = vector.extract_strided_slice %272 {offsets = [0, 0, 0], sizes = [1, 8, 32], strides = [1, 1, 1]} : vector<2x8x32xf32> to vector<1x8x32xf32>
    %274 = vector.shape_cast %273 : vector<1x8x32xf32> to vector<8x32xf32>
    %275 = arith.mulf %269, %274 : vector<8x32xf32>
    %276 = arith.addf %244, %275 : vector<8x32xf32>
    %277 = vector.extract_strided_slice %272 {offsets = [1, 0, 0], sizes = [1, 8, 32], strides = [1, 1, 1]} : vector<2x8x32xf32> to vector<1x8x32xf32>
    %278 = vector.shape_cast %277 : vector<1x8x32xf32> to vector<8x32xf32>
    %279 = arith.mulf %269, %278 : vector<8x32xf32>
    %280 = arith.addf %248, %279 : vector<8x32xf32>
    %c8_i32_83 = arith.constant 8 : i32
    %c0_84 = arith.constant 0 : index
    %c0_85 = arith.constant 0 : index
    %281 = vector.load %arg7[%c0_84, %c0_85] : memref<1x2xf32, #tpu.memory_space<vmem>>, vector<1x2xf32>
    %cst_86 = arith.constant dense<0.000000e+00> : vector<8xf32>
    %282 = vector.multi_reduction <add>, %276, %cst_86 [1] : vector<8x32xf32> to vector<8xf32>
    %283 = vector.shape_cast %282 : vector<8xf32> to vector<8x1xf32>
    %284 = vector.extract_strided_slice %281 {offsets = [0, 0], sizes = [1, 1], strides = [1, 1]} : vector<1x2xf32> to vector<1x1xf32>
    %285 = vector.broadcast %284 : vector<1x1xf32> to vector<8x1xf32>
    %286 = arith.addf %283, %285 : vector<8x1xf32>
    %cst_87 = arith.constant dense<0.000000e+00> : vector<8xf32>
    %287 = vector.multi_reduction <add>, %280, %cst_87 [1] : vector<8x32xf32> to vector<8xf32>
    %288 = vector.shape_cast %287 : vector<8xf32> to vector<8x1xf32>
    %289 = vector.extract_strided_slice %281 {offsets = [0, 1], sizes = [1, 1], strides = [1, 1]} : vector<1x2xf32> to vector<1x1xf32>
    %290 = vector.broadcast %289 : vector<1x1xf32> to vector<8x1xf32>
    %291 = arith.addf %288, %290 : vector<8x1xf32>
    %292 = arith.subf %286, %291 : vector<8x1xf32>
    %293 = arith.negf %292 : vector<8x1xf32>
    %294 = math.exp %293 : vector<8x1xf32>
    %cst_88 = arith.constant 1.000000e+00 : f32
    %295 = vector.broadcast %cst_88 : f32 to vector<8x1xf32>
    %296 = arith.addf %295, %294 : vector<8x1xf32>
    %297 = arith.divf %295, %296 : vector<8x1xf32>
    %cst_89 = arith.constant 1.000000e+00 : f32
    %298 = vector.broadcast %cst_89 : f32 to vector<8x1xf32>
    %299 = arith.subf %298, %297 : vector<8x1xf32>
    %300 = tpu.iota {dimensions = array<i32: 1>} : vector<8x2xi32>
    %c0_i32_90 = arith.constant 0 : i32
    %301 = vector.broadcast %c0_i32_90 : i32 to vector<8x2xi32>
    %302 = arith.cmpi eq, %300, %301 : vector<8x2xi32>
    %303 = vector.shape_cast %297 : vector<8x1xf32> to vector<8x1xf32>
    %304 = vector.broadcast %303 : vector<8x1xf32> to vector<8x2xf32>
    %305 = vector.shape_cast %299 : vector<8x1xf32> to vector<8x1xf32>
    %306 = vector.broadcast %305 : vector<8x1xf32> to vector<8x2xf32>
    %307 = arith.select %302, %304, %306 : vector<8x2xi1>, vector<8x2xf32>
    %c0_91 = arith.constant 0 : index
    %c0_92 = arith.constant 0 : index
    %308 = vector.load %arg8[%c0_91, %c0_92] : memref<8x2xf32, #tpu.memory_space<vmem>>, vector<8x2xf32>
    tpu.vector_store %arg8[%c0_91, %c0_92], %307 {strides = array<i32>} : memref<8x2xf32, #tpu.memory_space<vmem>>, vector<8x2xf32>,
    return
  }
}

</mosaic_0001>

<llo_original>
// kernel: latent_lstm_forward.1
$region0: #{latent_lstm_forward.1}
  #allocation0 [shape = 'u32[]', space=smem, size = 0x4, offset = 0x4, fixed_abs, tag = 'smem constant byte address 0x4 - core index']
  #allocation1 [shape = 'u32[72,128]{1,0:T(1,128)}', space=vmem, size = 0x9000, scoped, tag = 'internal scratch']
  #allocation2 [shape = 'f32[64,128]{1,0:T(8,128)}', space=vmem, size = 0x8000, scoped, tag = 'scratch operand']
  %s0 = inlined_call_operand.vmem [shape: f32[64,3], index: 0, kind: input, shape index: {}]
  %s1 = inlined_call_operand.vmem [shape: f32[64,16], index: 1, kind: input, shape index: {}]
  %s2 = inlined_call_operand.vmem [shape: f32[3,128], index: 2, kind: input, shape index: {}]
  %s3 = inlined_call_operand.vmem [shape: f32[16,128], index: 3, kind: input, shape index: {}]
  %s4 = inlined_call_operand.vmem [shape: f32[1,128], index: 4, kind: input, shape index: {}]
  %s5 = inlined_call_operand.hbm [shape: f32[32,128], index: 5, kind: input, shape index: {}]
  %s6 = inlined_call_operand.hbm [shape: f32[8,2,8,32], index: 6, kind: input, shape index: {}]
  %s7 = inlined_call_operand.vmem [shape: f32[1,2], index: 7, kind: input, shape index: {}]
  %s8 = inlined_call_operand.vmem [shape: f32[8,2], index: 8, kind: output, shape index: {}]
  %s9 = sld [smem:[#allocation0]]
  $region50: #{latent_lstm_forward.1} parent=0
    _
  %s11 = ssub.s32 1, %s9
  %s12 = scalar_select 0, %s11, %s9
  $region1: #{latent_lstm_forward.1} parent=0
    #allocation3 [shape = 'u8[16384]{0}', space=vmem, size = 0x4000, scoped, tag = 'input window, operand 5, single buffered']
    #allocation4 [shape = 's32[1]{0}', space=sflag, size = 0x4, scoped, tag = 'scoped memory for latent_lstm_forward.1']
    #allocation5 [shape = 'u8[65536]{0}', space=vmem, size = 0x10000, scoped, tag = 'input window, operand 6, single buffered']
    #allocation6 [shape = 's32[1]{0}', space=sflag, size = 0x4, scoped, tag = 'scoped memory for latent_lstm_forward.1']
    %13 = vsyncpa [#allocation4], 0
    %14 = vsyncpa [#allocation6], 0
    // Predicated region
    $region2: #{latent_lstm_forward.1} parent=1 // pred_check
      _
    $region3: #{latent_lstm_forward.1} parent=1 // pred_check_branch
      %16 = sbr.rel (0) target = $region5
    $region4: #{latent_lstm_forward.1} parent=1 // pred_region
      _
    $region5: #{latent_lstm_forward.1} parent=1 // pred_fallthru
      _
    // Predicated region
    $region6: #{latent_lstm_forward.1} parent=1 // pred_check
      _
    $region7: #{latent_lstm_forward.1} parent=1 // pred_check_branch
      %18 = sbr.rel (0) target = $region9
    $region8: #{latent_lstm_forward.1} parent=1 // pred_region
      _
    $region9: #{latent_lstm_forward.1} parent=1 // pred_fallthru
      _
    // Predicated region
    $region10: #{latent_lstm_forward.1} parent=1 // pred_check
      _
    $region11: #{latent_lstm_forward.1} parent=1 // pred_check_branch
      %20 = sbr.rel (0) target = $region13
    $region12: #{latent_lstm_forward.1} parent=1 // pred_region
      _
    $region13: #{latent_lstm_forward.1} parent=1 // pred_fallthru
      _
    // Predicated region
    $region14: #{latent_lstm_forward.1} parent=1 // pred_check
      _
    $region15: #{latent_lstm_forward.1} parent=1 // pred_check_branch
      %22 = sbr.rel (0) target = $region17
    $region16: #{latent_lstm_forward.1} parent=1 // pred_region
      _
    $region17: #{latent_lstm_forward.1} parent=1 // pred_fallthru
      _
    // Predicated region
    $region18: #{latent_lstm_forward.1} parent=1 // pred_check
      _
    $region19: #{latent_lstm_forward.1} parent=1 // pred_check_branch
      %24 = sbr.rel (0) target = $region21
    $region20: #{latent_lstm_forward.1} parent=1 // pred_region
      _
    $region21: #{latent_lstm_forward.1} parent=1 // pred_fallthru
      _
    // Predicated region
    $region22: #{latent_lstm_forward.1} parent=1 // pred_check
      _
    $region23: #{latent_lstm_forward.1} parent=1 // pred_check_branch
      %26 = sbr.rel (0) target = $region25
    $region24: #{latent_lstm_forward.1} parent=1 // pred_region
      %28 = vsyncadd [#allocation4], 0
      %s29 = sshll.u32 %s5, 4
      %s30 = int_to_ptr.hbm [resolvable:$true] %s29
      %s31 = sshll.u32 [#allocation3], 4
      %s32 = int_to_ptr.vmem [resolvable:$true] %s31
      %37 = dma.hbm_to_vmem [thread:$0]  %s30, 512, %s32, [#allocation4], 128, 128, 8
    $region25: #{latent_lstm_forward.1} parent=1 // pred_fallthru
      _
    // Predicated region
    $region26: #{latent_lstm_forward.1} parent=1 // pred_check
      _
    $region27: #{latent_lstm_forward.1} parent=1 // pred_check_branch
      %39 = sbr.rel (0) target = $region29
    $region28: #{latent_lstm_forward.1} parent=1 // pred_region
      %41 = vsyncadd [#allocation6], 0
      %s42 = sshll.u32 %s6, 4
      %s43 = int_to_ptr.hbm [resolvable:$true] %s42
      %s44 = sshll.u32 [#allocation5], 4
      %s45 = int_to_ptr.vmem [resolvable:$true] %s44
      %50 = dma.hbm_to_vmem [thread:$0]  %s43, 2048, %s45, [#allocation6], 128, 128, 8
    $region29: #{latent_lstm_forward.1} parent=1 // pred_fallthru
      _
    // Predicated region
    $region30: #{latent_lstm_forward.1} parent=1 // pred_check
      _
    $region31: #{latent_lstm_forward.1} parent=1 // pred_check_branch
      %52 = sbr.rel (0) target = $region33
    $region32: #{latent_lstm_forward.1} parent=1 // pred_region
      _
    $region33: #{latent_lstm_forward.1} parent=1 // pred_fallthru
      _
    // Predicated region
    $region34: #{latent_lstm_forward.1} parent=1 // pred_check
      _
    $region35: #{latent_lstm_forward.1} parent=1 // pred_check_branch
      %54 = sbr.rel (0) target = $region37
    $region36: #{latent_lstm_forward.1} parent=1 // pred_region
      %56 = dma.done [#allocation4], 512
    $region37: #{latent_lstm_forward.1} parent=1 // pred_fallthru
      _
    // Predicated region
    $region38: #{latent_lstm_forward.1} parent=1 // pred_check
      _
    $region39: #{latent_lstm_forward.1} parent=1 // pred_check_branch
      %58 = sbr.rel (0) target = $region41
    $region40: #{latent_lstm_forward.1} parent=1 // pred_region
      %60 = dma.done [#allocation6], 2048
    $region41: #{latent_lstm_forward.1} parent=1 // pred_fallthru
      _
    %v61 = vld [vmem:[%s0] sm:$0xff]
    %v62 = vld [vmem:[%s0 + $0x8] sm:$0xff]
    %v63 = vld [vmem:[%s0 + $0x10] sm:$0xff]
    %v64 = vld [vmem:[%s0 + $0x18] sm:$0xff]
    %v65 = vld [vmem:[%s0 + $0x20] sm:$0xff]
    %v66 = vld [vmem:[%s0 + $0x28] sm:$0xff]
    %v67 = vld [vmem:[%s0 + $0x30] sm:$0xff]
    %v68 = vld [vmem:[%s0 + $0x38] sm:$0xff]
    %v69 = vld [vmem:[%s2] sm:$0x7]
    %v70 = vld [vmem:[%s1] sm:$0xff]
    %v71 = vld [vmem:[%s1 + $0x8] sm:$0xff]
    %v72 = vld [vmem:[%s1 + $0x10] sm:$0xff]
    %v73 = vld [vmem:[%s1 + $0x18] sm:$0xff]
    %v74 = vld [vmem:[%s1 + $0x20] sm:$0xff]
    %v75 = vld [vmem:[%s1 + $0x28] sm:$0xff]
    %v76 = vld [vmem:[%s1 + $0x30] sm:$0xff]
    %v77 = vld [vmem:[%s1 + $0x38] sm:$0xff]
    %v78 = vld [vmem:[%s3] sm:$0xff]
    %v79 = vld [vmem:[%s3 + $0x8] sm:$0xff]
    %vm80 = vcmask 130048
    %v82 = vsel %vm80, %v70, 0
    %v85 = vsel %vm80, %v71, 0
    %v88 = vsel %vm80, %v72, 0
    %v91 = vsel %vm80, %v73, 0
    %v94 = vsel %vm80, %v74, 0
    %v97 = vsel %vm80, %v75, 0
    %v100 = vsel %vm80, %v76, 0
    %v103 = vsel %vm80, %v77, 0
    %105 = vmatpush.msra.mxu0 0.0
    %106 = vmatpush.msra.mxu0 0.0
    %107 = vmatpush.msra.mxu0 0.0
    %108 = vmatpush.msra.mxu0 0.0
    %109 = vmatpush.msra.mxu0 0.0
    %110 = vmatpush.msra.mxu0 0.0
    %111 = vmatpush.msra.mxu0 0.0
    %112 = vmatpush.msra.mxu0 0.0
    %113 = vmatpush.msra.mxu0 0.0
    %114 = vmatpush.msra.mxu0 0.0
    %115 = vmatpush.msra.mxu0 0.0
    %116 = vmatpush.msra.mxu0 0.0
    %117 = vmatpush.msra.mxu0 0.0
    %118 = vmatpush.msra.mxu0 0.0
    %119 = vmatpush.msra.mxu0 %v79
    %120 = vmatpush.msra.mxu0 %v78
    %121 = vmatmul.f32.gmra.mxu0 %v82
    %v122 = vpop.f32.mrf.mxu0
    %v123 = vadd.f32 0.0, %v122
    %124 = vmatmul.f32.gmra.mxu0 %v85
    %v125 = vpop.f32.mrf.mxu0
    %v126 = vadd.f32 0.0, %v125
    %127 = vmatmul.f32.gmra.mxu0 %v88
    %v128 = vpop.f32.mrf.mxu0
    %v129 = vadd.f32 0.0, %v128
    %130 = vmatmul.f32.gmra.mxu0 %v91
    %v131 = vpop.f32.mrf.mxu0
    %v132 = vadd.f32 0.0, %v131
    %133 = vmatmul.f32.gmra.mxu0 %v94
    %v134 = vpop.f32.mrf.mxu0
    %v135 = vadd.f32 0.0, %v134
    %136 = vmatmul.f32.gmra.mxu0 %v97
    %v137 = vpop.f32.mrf.mxu0
    %v138 = vadd.f32 0.0, %v137
    %139 = vmatmul.f32.gmra.mxu0 %v100
    %v140 = vpop.f32.mrf.mxu0
    %v141 = vadd.f32 0.0, %v140
    %142 = vmatmul.f32.gmra.mxu0 %v103
    %v143 = vpop.f32.mrf.mxu0
    %v144 = vadd.f32 0.0, %v143
    %145 = vdwg.mxu0
    %vm146 = vcmask 23552
    %v148 = vsel %vm146, %v61, 0
    %v151 = vsel %vm146, %v62, 0
    %v154 = vsel %vm146, %v63, 0
    %v157 = vsel %vm146, %v64, 0
    %v160 = vsel %vm146, %v65, 0
    %v163 = vsel %vm146, %v66, 0
    %v166 = vsel %vm146, %v67, 0
    %v169 = vsel %vm146, %v68, 0
    %vm171 = vcmask 1042432
    %v173 = vsel %vm171, %v69, 0
    %175 = vmatpush.msra.mxu0 0.0
    %176 = vmatpush.msra.mxu0 0.0
    %177 = vmatpush.msra.mxu0 0.0
    %178 = vmatpush.msra.mxu0 0.0
    %179 = vmatpush.msra.mxu0 0.0
    %180 = vmatpush.msra.mxu0 0.0
    %181 = vmatpush.msra.mxu0 0.0
    %182 = vmatpush.msra.mxu0 0.0
    %183 = vmatpush.msra.mxu0 0.0
    %184 = vmatpush.msra.mxu0 0.0
    %185 = vmatpush.msra.mxu0 0.0
    %186 = vmatpush.msra.mxu0 0.0
    %187 = vmatpush.msra.mxu0 0.0
    %188 = vmatpush.msra.mxu0 0.0
    %189 = vmatpush.msra.mxu0 0.0
    %190 = vmatpush.msra.mxu0 %v173
    %191 = vmatmul.f32.gmra.mxu0 %v148
    %v192 = vpop.f32.mrf.mxu0
    %v193 = vadd.f32 %v123, %v192
    %194 = vmatmul.f32.gmra.mxu0 %v151
    %v195 = vpop.f32.mrf.mxu0
    %v196 = vadd.f32 %v126, %v195
    %197 = vmatmul.f32.gmra.mxu0 %v154
    %v198 = vpop.f32.mrf.mxu0
    %v199 = vadd.f32 %v129, %v198
    %200 = vmatmul.f32.gmra.mxu0 %v157
    %v201 = vpop.f32.mrf.mxu0
    %v202 = vadd.f32 %v132, %v201
    %203 = vmatmul.f32.gmra.mxu0 %v160
    %v204 = vpop.f32.mrf.mxu0
    %v205 = vadd.f32 %v135, %v204
    %206 = vmatmul.f32.gmra.mxu0 %v163
    %v207 = vpop.f32.mrf.mxu0
    %v208 = vadd.f32 %v138, %v207
    %209 = vmatmul.f32.gmra.mxu0 %v166
    %v210 = vpop.f32.mrf.mxu0
    %v211 = vadd.f32 %v141, %v210
    %212 = vmatmul.f32.gmra.mxu0 %v169
    %v213 = vpop.f32.mrf.mxu0
    %v214 = vadd.f32 %v144, %v213
    %215 = vdwg.mxu0
    %v216 = vld [vmem:[%s4] sm:$0x1]
    %v218 = vperm.slane %v216, 0
    %v220 = vadd.f32 %v193, %v218
    %v221 = vadd.f32 %v196, %v218
    %v222 = vadd.f32 %v199, %v218
    %v223 = vadd.f32 %v202, %v218
    %v224 = vadd.f32 %v205, %v218
    %v225 = vadd.f32 %v208, %v218
    %v226 = vadd.f32 %v211, %v218
    %v227 = vadd.f32 %v214, %v218
    %228 = vst [vmem:[#allocation2] sm:$0xff] %v220
    %229 = vst [vmem:[#allocation2 + $0x8] sm:$0xff] %v221
    %230 = vst [vmem:[#allocation2 + $0x10] sm:$0xff] %v222
    %231 = vst [vmem:[#allocation2 + $0x18] sm:$0xff] %v223
    %232 = vst [vmem:[#allocation2 + $0x20] sm:$0xff] %v224
    %233 = vst [vmem:[#allocation2 + $0x28] sm:$0xff] %v225
    %234 = vst [vmem:[#allocation2 + $0x30] sm:$0xff] %v226
    %235 = vst [vmem:[#allocation2 + $0x38] sm:$0xff] %v227
    %v236 = vld [vmem:[#allocation3] sm:$0xff]
    %v237 = vld [vmem:[#allocation3 + $0x8] sm:$0xff]
    %v238 = vld [vmem:[#allocation3 + $0x10] sm:$0xff]
    %v239 = vld [vmem:[#allocation3 + $0x18] sm:$0xff]
    %v240 = vlaneseq
    %v241 = vand.u32 %v240, 127
    %vm242 = vcmp.ge.s32.totalorder %v241, 64
    %vm243 = vcmp.lt.s32.totalorder %v241, 96
    %vm244 = vmand %vm242, %vm243
    %v245 = vsel %vm244, 1.0, 0.5
    %v246 = vld [vmem:[#allocation2] sm:$0xff]
    %vm247 = vcmask 261120
    %v249 = vsel %vm247, 0.0, 0
    %251 = vmatpush.msra.mxu0 0.0
    %252 = vmatpush.msra.mxu0 0.0
    %253 = vmatpush.msra.mxu0 0.0
    %254 = vmatpush.msra.mxu0 0.0
    %255 = vmatpush.msra.mxu0 0.0
    %256 = vmatpush.msra.mxu0 0.0
    %257 = vmatpush.msra.mxu0 0.0
    %258 = vmatpush.msra.mxu0 0.0
    %259 = vmatpush.msra.mxu0 0.0
    %260 = vmatpush.msra.mxu0 0.0
    %261 = vmatpush.msra.mxu0 0.0
    %262 = vmatpush.msra.mxu0 0.0
    %263 = vmatpush.msra.mxu0 %v239
    %264 = vmatpush.msra.mxu0 %v238
    %265 = vmatpush.msra.mxu0 %v237
    %266 = vmatpush.msra.mxu0 %v236
    %267 = vmatmul.f32.gmra.mxu0 %v249
    %v268 = vpop.f32.mrf.mxu0
    %v269 = vadd.f32 0.0, %v268
    %270 = vdwg.mxu0
    %v271 = vadd.f32 %v246, %v269
    %v272 = vmul.f32 %v271, %v245
    %v273 = vtanh.pop %v272
    %v274 = vadd.f32 %v273, 1.0
    %v275 = vmul.f32 %v274, 0.5
    %v276 = vmul.f32 %v275, 0.0
    %278 = vrot.lane.b32.xlu0 %v273, 64
    %v279 = vpop.permute.xlu0 %278
    %v281 = vmul.f32 %v275, %v279
    %283 = vrot.lane.b32.xlu0 %v281, 32
    %v284 = vpop.permute.xlu0 %283
    %v286 = vadd.f32 %v276, %v284
    %v287 = vtanh.pop %v286
    %289 = vrot.lane.b32.xlu0 %v287, 64
    %v290 = vpop.permute.xlu0 %289
    %v292 = vmul.f32 %v275, %v290
    %v293 = vld [vmem:[#allocation5] sm:$0xff]
    %v294 = vld [vmem:[#allocation5 + $0x8] sm:$0xff]
    %296 = vrot.lane.b32.xlu0 %v293, 96
    %v297 = vpop.permute.xlu0 %296
    %v299 = vmul.f32 %v292, %v297
    %v300 = vadd.f32 %v299, 0.0
    %302 = vrot.lane.b32.xlu0 %v294, 96
    %v303 = vpop.permute.xlu0 %302
    %v305 = vmul.f32 %v292, %v303
    %v306 = vadd.f32 %v305, 0.0
    %s307 = scalar_lea.vmem [#allocation2], 8
    %v308 = vld [vmem:[%s307] sm:$0xff]
    %310 = vrot.lane.b32.xlu0 %v292, 32
    %v311 = vpop.permute.xlu0 %310
    %v312 = vsel %vm247, %v311, 0
    %314 = vmatpush.msra.mxu0 0.0
    %315 = vmatpush.msra.mxu0 0.0
    %316 = vmatpush.msra.mxu0 0.0
    %317 = vmatpush.msra.mxu0 0.0
    %318 = vmatpush.msra.mxu0 0.0
    %319 = vmatpush.msra.mxu0 0.0
    %320 = vmatpush.msra.mxu0 0.0
    %321 = vmatpush.msra.mxu0 0.0
    %322 = vmatpush.msra.mxu0 0.0
    %323 = vmatpush.msra.mxu0 0.0
    %324 = vmatpush.msra.mxu0 0.0
    %325 = vmatpush.msra.mxu0 0.0
    %326 = vmatpush.msra.mxu0 %v239
    %327 = vmatpush.msra.mxu0 %v238
    %328 = vmatpush.msra.mxu0 %v237
    %329 = vmatpush.msra.mxu0 %v236
    %330 = vmatmul.f32.gmra.mxu0 %v312
    %v331 = vpop.f32.mrf.mxu0
    %v332 = vadd.f32 0.0, %v331
    %333 = vdwg.mxu0
    %v334 = vadd.f32 %v308, %v332
    %v335 = vmul.f32 %v334, %v245
    %v336 = vtanh.pop %v335
    %v337 = vadd.f32 %v336, 1.0
    %v338 = vmul.f32 %v337, 0.5
    %v339 = vmul.f32 %v338, %v286
    %341 = vrot.lane.b32.xlu0 %v336, 64
    %v342 = vpop.permute.xlu0 %341
    %v344 = vmul.f32 %v338, %v342
    %346 = vrot.lane.b32.xlu0 %v344, 32
    %v347 = vpop.permute.xlu0 %346
    %v349 = vadd.f32 %v339, %v347
    %v350 = vtanh.pop %v349
    %352 = vrot.lane.b32.xlu0 %v350, 64
    %v353 = vpop.permute.xlu0 %352
    %v355 = vmul.f32 %v338, %v353
    %s356 = scalar_lea.vmem [#allocation5], 16
    %v357 = vld [vmem:[%s356] sm:$0xff]
    %v358 = vld [vmem:[%s356 + $0x8] sm:$0xff]
    %360 = vrot.lane.b32.xlu0 %v357, 96
    %v361 = vpop.permute.xlu0 %360
    %v363 = vmul.f32 %v355, %v361
    %v364 = vadd.f32 %v300, %v363
    %366 = vrot.lane.b32.xlu0 %v358, 96
    %v367 = vpop.permute.xlu0 %366
    %v369 = vmul.f32 %v355, %v367
    %v370 = vadd.f32 %v306, %v369
    %s371 = scalar_lea.vmem [#allocation2], 16
    %v372 = vld [vmem:[%s371] sm:$0xff]
    %374 = vrot.lane.b32.xlu0 %v355, 32
    %v375 = vpop.permute.xlu0 %374
    %v376 = vsel %vm247, %v375, 0
    %378 = vmatpush.msra.mxu0 0.0
    %379 = vmatpush.msra.mxu0 0.0
    %380 = vmatpush.msra.mxu0 0.0
    %381 = vmatpush.msra.mxu0 0.0
    %382 = vmatpush.msra.mxu0 0.0
    %383 = vmatpush.msra.mxu0 0.0
    %384 = vmatpush.msra.mxu0 0.0
    %385 = vmatpush.msra.mxu0 0.0
    %386 = vmatpush.msra.mxu0 0.0
    %387 = vmatpush.msra.mxu0 0.0
    %388 = vmatpush.msra.mxu0 0.0
    %389 = vmatpush.msra.mxu0 0.0
    %390 = vmatpush.msra.mxu0 %v239
    %391 = vmatpush.msra.mxu0 %v238
    %392 = vmatpush.msra.mxu0 %v237
    %393 = vmatpush.msra.mxu0 %v236
    %394 = vmatmul.f32.gmra.mxu0 %v376
    %v395 = vpop.f32.mrf.mxu0
    %v396 = vadd.f32 0.0, %v395
    %397 = vdwg.mxu0
    %v398 = vadd.f32 %v372, %v396
    %v399 = vmul.f32 %v398, %v245
    %v400 = vtanh.pop %v399
    %v401 = vadd.f32 %v400, 1.0
    %v402 = vmul.f32 %v401, 0.5
    %v403 = vmul.f32 %v402, %v349
    %405 = vrot.lane.b32.xlu0 %v400, 64
    %v406 = vpop.permute.xlu0 %405
    %v408 = vmul.f32 %v402, %v406
    %410 = vrot.lane.b32.xlu0 %v408, 32
    %v411 = vpop.permute.xlu0 %410
    %v413 = vadd.f32 %v403, %v411
    %v414 = vtanh.pop %v413
    %416 = vrot.lane.b32.xlu0 %v414, 64
    %v417 = vpop.permute.xlu0 %416
    %v419 = vmul.f32 %v402, %v417
    %s420 = scalar_lea.vmem [#allocation5], 32
    %v421 = vld [vmem:[%s420] sm:$0xff]
    %v422 = vld [vmem:[%s420 + $0x8] sm:$0xff]
    %424 = vrot.lane.b32.xlu0 %v421, 96
    %v425 = vpop.permute.xlu0 %424
    %v427 = vmul.f32 %v419, %v425
    %v428 = vadd.f32 %v364, %v427
    %430 = vrot.lane.b32.xlu0 %v422, 96
    %v431 = vpop.permute.xlu0 %430
    %v433 = vmul.f32 %v419, %v431
    %v434 = vadd.f32 %v370, %v433
    %s435 = scalar_lea.vmem [#allocation2], 24
    %v436 = vld [vmem:[%s435] sm:$0xff]
    %438 = vrot.lane.b32.xlu0 %v419, 32
    %v439 = vpop.permute.xlu0 %438
    %v440 = vsel %vm247, %v439, 0
    %442 = vmatpush.msra.mxu0 0.0
    %443 = vmatpush.msra.mxu0 0.0
    %444 = vmatpush.msra.mxu0 0.0
    %445 = vmatpush.msra.mxu0 0.0
    %446 = vmatpush.msra.mxu0 0.0
    %447 = vmatpush.msra.mxu0 0.0
    %448 = vmatpush.msra.mxu0 0.0
    %449 = vmatpush.msra.mxu0 0.0
    %450 = vmatpush.msra.mxu0 0.0
    %451 = vmatpush.msra.mxu0 0.0
    %452 = vmatpush.msra.mxu0 0.0
    %453 = vmatpush.msra.mxu0 0.0
    %454 = vmatpush.msra.mxu0 %v239
    %455 = vmatpush.msra.mxu0 %v238
    %456 = vmatpush.msra.mxu0 %v237
    %457 = vmatpush.msra.mxu0 %v236
    %458 = vmatmul.f32.gmra.mxu0 %v440
    %v459 = vpop.f32.mrf.mxu0
    %v460 = vadd.f32 0.0, %v459
    %461 = vdwg.mxu0
    %v462 = vadd.f32 %v436, %v460
    %v463 = vmul.f32 %v462, %v245
    %v464 = vtanh.pop %v463
    %v465 = vadd.f32 %v464, 1.0
    %v466 = vmul.f32 %v465, 0.5
    %v467 = vmul.f32 %v466, %v413
    %469 = vrot.lane.b32.xlu0 %v464, 64
    %v470 = vpop.permute.xlu0 %469
    %v472 = vmul.f32 %v466, %v470
    %474 = vrot.lane.b32.xlu0 %v472, 32
    %v475 = vpop.permute.xlu0 %474
    %v477 = vadd.f32 %v467, %v475
    %v478 = vtanh.pop %v477
    %480 = vrot.lane.b32.xlu0 %v478, 64
    %v481 = vpop.permute.xlu0 %480
    %v483 = vmul.f32 %v466, %v481
    %s484 = scalar_lea.vmem [#allocation5], 48
    %v485 = vld [vmem:[%s484] sm:$0xff]
    %v486 = vld [vmem:[%s484 + $0x8] sm:$0xff]
    %488 = vrot.lane.b32.xlu0 %v485, 96
    %v489 = vpop.permute.xlu0 %488
    %v491 = vmul.f32 %v483, %v489
    %v492 = vadd.f32 %v428, %v491
    %494 = vrot.lane.b32.xlu0 %v486, 96
    %v495 = vpop.permute.xlu0 %494
    %v497 = vmul.f32 %v483, %v495
    %v498 = vadd.f32 %v434, %v497
    %s499 = scalar_lea.vmem [#allocation2], 32
    %v500 = vld [vmem:[%s499] sm:$0xff]
    %502 = vrot.lane.b32.xlu0 %v483, 32
    %v503 = vpop.permute.xlu0 %502
    %v504 = vsel %vm247, %v503, 0
    %506 = vmatpush.msra.mxu0 0.0
    %507 = vmatpush.msra.mxu0 0.0
    %508 = vmatpush.msra.mxu0 0.0
    %509 = vmatpush.msra.mxu0 0.0
    %510 = vmatpush.msra.mxu0 0.0
    %511 = vmatpush.msra.mxu0 0.0
    %512 = vmatpush.msra.mxu0 0.0
    %513 = vmatpush.msra.mxu0 0.0
    %514 = vmatpush.msra.mxu0 0.0
    %515 = vmatpush.msra.mxu0 0.0
    %516 = vmatpush.msra.mxu0 0.0
    %517 = vmatpush.msra.mxu0 0.0
    %518 = vmatpush.msra.mxu0 %v239
    %519 = vmatpush.msra.mxu0 %v238
    %520 = vmatpush.msra.mxu0 %v237
    %521 = vmatpush.msra.mxu0 %v236
    %522 = vmatmul.f32.gmra.mxu0 %v504
    %v523 = vpop.f32.mrf.mxu0
    %v524 = vadd.f32 0.0, %v523
    %525 = vdwg.mxu0
    %v526 = vadd.f32 %v500, %v524
    %v527 = vmul.f32 %v526, %v245
    %v528 = vtanh.pop %v527
    %v529 = vadd.f32 %v528, 1.0
    %v530 = vmul.f32 %v529, 0.5
    %v531 = vmul.f32 %v530, %v477
    %533 = vrot.lane.b32.xlu0 %v528, 64
    %v534 = vpop.permute.xlu0 %533
    %v536 = vmul.f32 %v530, %v534
    %538 = vrot.lane.b32.xlu0 %v536, 32
    %v539 = vpop.permute.xlu0 %538
    %v541 = vadd.f32 %v531, %v539
    %v542 = vtanh.pop %v541
    %544 = vrot.lane.b32.xlu0 %v542, 64
    %v545 = vpop.permute.xlu0 %544
    %v547 = vmul.f32 %v530, %v545
    %s548 = scalar_lea.vmem [#allocation5], 64
    %v549 = vld [vmem:[%s548] sm:$0xff]
    %v550 = vld [vmem:[%s548 + $0x8] sm:$0xff]
    %552 = vrot.lane.b32.xlu0 %v549, 96
    %v553 = vpop.permute.xlu0 %552
    %v555 = vmul.f32 %v547, %v553
    %v556 = vadd.f32 %v492, %v555
    %558 = vrot.lane.b32.xlu0 %v550, 96
    %v559 = vpop.permute.xlu0 %558
    %v561 = vmul.f32 %v547, %v559
    %v562 = vadd.f32 %v498, %v561
    %s563 = scalar_lea.vmem [#allocation2], 40
    %v564 = vld [vmem:[%s563] sm:$0xff]
    %566 = vrot.lane.b32.xlu0 %v547, 32
    %v567 = vpop.permute.xlu0 %566
    %v568 = vsel %vm247, %v567, 0
    %570 = vmatpush.msra.mxu0 0.0
    %571 = vmatpush.msra.mxu0 0.0
    %572 = vmatpush.msra.mxu0 0.0
    %573 = vmatpush.msra.mxu0 0.0
    %574 = vmatpush.msra.mxu0 0.0
    %575 = vmatpush.msra.mxu0 0.0
    %576 = vmatpush.msra.mxu0 0.0
    %577 = vmatpush.msra.mxu0 0.0
    %578 = vmatpush.msra.mxu0 0.0
    %579 = vmatpush.msra.mxu0 0.0
    %580 = vmatpush.msra.mxu0 0.0
    %581 = vmatpush.msra.mxu0 0.0
    %582 = vmatpush.msra.mxu0 %v239
    %583 = vmatpush.msra.mxu0 %v238
    %584 = vmatpush.msra.mxu0 %v237
    %585 = vmatpush.msra.mxu0 %v236
    %586 = vmatmul.f32.gmra.mxu0 %v568
    %v587 = vpop.f32.mrf.mxu0
    %v588 = vadd.f32 0.0, %v587
    %589 = vdwg.mxu0
    %v590 = vadd.f32 %v564, %v588
    %v591 = vmul.f32 %v590, %v245
    %v592 = vtanh.pop %v591
    %v593 = vadd.f32 %v592, 1.0
    %v594 = vmul.f32 %v593, 0.5
    %v595 = vmul.f32 %v594, %v541
    %597 = vrot.lane.b32.xlu0 %v592, 64
    %v598 = vpop.permute.xlu0 %597
    %v600 = vmul.f32 %v594, %v598
    %602 = vrot.lane.b32.xlu0 %v600, 32
    %v603 = vpop.permute.xlu0 %602
    %v605 = vadd.f32 %v595, %v603
    %v606 = vtanh.pop %v605
    %608 = vrot.lane.b32.xlu0 %v606, 64
    %v609 = vpop.permute.xlu0 %608
    %v611 = vmul.f32 %v594, %v609
    %s612 = scalar_lea.vmem [#allocation5], 80
    %v613 = vld [vmem:[%s612] sm:$0xff]
    %v614 = vld [vmem:[%s612 + $0x8] sm:$0xff]
    %616 = vrot.lane.b32.xlu0 %v613, 96
    %v617 = vpop.permute.xlu0 %616
    %v619 = vmul.f32 %v611, %v617
    %v620 = vadd.f32 %v556, %v619
    %622 = vrot.lane.b32.xlu0 %v614, 96
    %v623 = vpop.permute.xlu0 %622
    %v625 = vmul.f32 %v611, %v623
    %v626 = vadd.f32 %v562, %v625
    %s627 = scalar_lea.vmem [#allocation2], 48
    %v628 = vld [vmem:[%s627] sm:$0xff]
    %630 = vrot.lane.b32.xlu0 %v611, 32
    %v631 = vpop.permute.xlu0 %630
    %v632 = vsel %vm247, %v631, 0
    %634 = vmatpush.msra.mxu0 0.0
    %635 = vmatpush.msra.mxu0 0.0
    %636 = vmatpush.msra.mxu0 0.0
    %637 = vmatpush.msra.mxu0 0.0
    %638 = vmatpush.msra.mxu0 0.0
    %639 = vmatpush.msra.mxu0 0.0
    %640 = vmatpush.msra.mxu0 0.0
    %641 = vmatpush.msra.mxu0 0.0
    %642 = vmatpush.msra.mxu0 0.0
    %643 = vmatpush.msra.mxu0 0.0
    %644 = vmatpush.msra.mxu0 0.0
    %645 = vmatpush.msra.mxu0 0.0
    %646 = vmatpush.msra.mxu0 %v239
    %647 = vmatpush.msra.mxu0 %v238
    %648 = vmatpush.msra.mxu0 %v237
    %649 = vmatpush.msra.mxu0 %v236
    %650 = vmatmul.f32.gmra.mxu0 %v632
    %v651 = vpop.f32.mrf.mxu0
    %v652 = vadd.f32 0.0, %v651
    %653 = vdwg.mxu0
    %v654 = vadd.f32 %v628, %v652
    %v655 = vmul.f32 %v654, %v245
    %v656 = vtanh.pop %v655
    %v657 = vadd.f32 %v656, 1.0
    %v658 = vmul.f32 %v657, 0.5
    %v659 = vmul.f32 %v658, %v605
    %661 = vrot.lane.b32.xlu0 %v656, 64
    %v662 = vpop.permute.xlu0 %661
    %v664 = vmul.f32 %v658, %v662
    %666 = vrot.lane.b32.xlu0 %v664, 32
    %v667 = vpop.permute.xlu0 %666
    %v669 = vadd.f32 %v659, %v667
    %v670 = vtanh.pop %v669
    %672 = vrot.lane.b32.xlu0 %v670, 64
    %v673 = vpop.permute.xlu0 %672
    %v675 = vmul.f32 %v658, %v673
    %s676 = scalar_lea.vmem [#allocation5], 96
    %v677 = vld [vmem:[%s676] sm:$0xff]
    %v678 = vld [vmem:[%s676 + $0x8] sm:$0xff]
    %680 = vrot.lane.b32.xlu0 %v677, 96
    %v681 = vpop.permute.xlu0 %680
    %v683 = vmul.f32 %v675, %v681
    %v684 = vadd.f32 %v620, %v683
    %686 = vrot.lane.b32.xlu0 %v678, 96
    %v687 = vpop.permute.xlu0 %686
    %v689 = vmul.f32 %v675, %v687
    %v690 = vadd.f32 %v626, %v689
    %s691 = scalar_lea.vmem [#allocation2], 56
    %v692 = vld [vmem:[%s691] sm:$0xff]
    %694 = vrot.lane.b32.xlu0 %v675, 32
    %v695 = vpop.permute.xlu0 %694
    %v696 = vsel %vm247, %v695, 0
    %698 = vmatpush.msra.mxu0 0.0
    %699 = vmatpush.msra.mxu0 0.0
    %700 = vmatpush.msra.mxu0 0.0
    %701 = vmatpush.msra.mxu0 0.0
    %702 = vmatpush.msra.mxu0 0.0
    %703 = vmatpush.msra.mxu0 0.0
    %704 = vmatpush.msra.mxu0 0.0
    %705 = vmatpush.msra.mxu0 0.0
    %706 = vmatpush.msra.mxu0 0.0
    %707 = vmatpush.msra.mxu0 0.0
    %708 = vmatpush.msra.mxu0 0.0
    %709 = vmatpush.msra.mxu0 0.0
    %710 = vmatpush.msra.mxu0 %v239
    %711 = vmatpush.msra.mxu0 %v238
    %712 = vmatpush.msra.mxu0 %v237
    %713 = vmatpush.msra.mxu0 %v236
    %714 = vmatmul.f32.gmra.mxu0 %v696
    %v715 = vpop.f32.mrf.mxu0
    %v716 = vadd.f32 0.0, %v715
    %717 = vdwg.mxu0
    %v718 = vadd.f32 %v692, %v716
    %v719 = vmul.f32 %v718, %v245
    %v720 = vtanh.pop %v719
    %v721 = vadd.f32 %v720, 1.0
    %v722 = vmul.f32 %v721, 0.5
    %v723 = vmul.f32 %v722, %v669
    %725 = vrot.lane.b32.xlu0 %v720, 64
    %v726 = vpop.permute.xlu0 %725
    %v728 = vmul.f32 %v722, %v726
    %730 = vrot.lane.b32.xlu0 %v728, 32
    %v731 = vpop.permute.xlu0 %730
    %v733 = vadd.f32 %v723, %v731
    %v734 = vtanh.pop %v733
    %736 = vrot.lane.b32.xlu0 %v734, 64
    %v737 = vpop.permute.xlu0 %736
    %v739 = vmul.f32 %v722, %v737
    %s740 = scalar_lea.vmem [#allocation5], 112
    %v741 = vld [vmem:[%s740] sm:$0xff]
    %v742 = vld [vmem:[%s740 + $0x8] sm:$0xff]
    %744 = vrot.lane.b32.xlu0 %v741, 96
    %v745 = vpop.permute.xlu0 %744
    %v747 = vmul.f32 %v739, %v745
    %v748 = vadd.f32 %v684, %v747
    %750 = vrot.lane.b32.xlu0 %v742, 96
    %v751 = vpop.permute.xlu0 %750
    %v753 = vmul.f32 %v739, %v751
    %v754 = vadd.f32 %v690, %v753
    %v755 = vld [vmem:[%s7] sm:$0x1]
    %757 = vrot.lane.b32.xlu0 %v748, 32
    %v758 = vpop.permute.xlu0 %757
    %v760 = vsel %vm247, %v758, 0.0
    %761 = vadd.xlane.f32.xlu0 %v760
    %v762 = vpop.xlane.xlu0 %761
    %v764 = vperm.slane %v755, 0
    %v766 = vadd.f32 %v762, %v764
    %768 = vrot.lane.b32.xlu0 %v754, 32
    %v769 = vpop.permute.xlu0 %768
    %v771 = vsel %vm247, %v769, 0.0
    %772 = vadd.xlane.f32.xlu0 %v771
    %v773 = vpop.xlane.xlu0 %772
    %v774 = vadd.f32 %v773, %v764
    %776 = vrot.lane.b32.xlu0 %v774, 127
    %v777 = vpop.permute.xlu0 %776
    %v779 = vsub.f32 %v766, %v777
    %v780 = vxor.u32 %v779, 2147483648
    %v781 = vmul.f32 %v780, 1.442695
    %v782 = vpow.pop %v781
    %v783 = vadd.f32 %v782, 1.0
    %v784 = vrcp.pop %v783
    %v785 = vmul.f32 %v783, %v784
    %v786 = vsub.f32 1.0, %v785
    %v787 = vmul.f32 %v784, %v786
    %v788 = vadd.f32 %v784, %v787
    %vm789 = vweird.f32 %v783
    %vm790 = vweird.f32 %v784
    %vm791 = vmor %vm789, %vm790
    %v792 = vsel %vm791, %v784, %v788
    %v793 = vand.u32 2147483647, %v783
    %vm794 = vcmp.eq.f32.partialorder %v793, 8.507059e+37
    %v795 = vand.u32 %v783, 2147483648
    %v796 = vor.u32 1.1754944e-38, %v795
    %v797 = vsel %vm794, %v796, %v792
    %v798 = vmul.f32 1.0, %v797
    %v799 = vsub.f32 1.0, %v798
    %vm800 = vcmp.eq.s32.totalorder %v241, 0
    %802 = vset.pattern.permute.xlu0 0
    %803 = vperm.xlu0 %802, %v798
    %v804 = vpop.permute.xlu0 %803
    %807 = vset.pattern.permute.xlu0 0
    %808 = vperm.xlu0 %807, %v799
    %v809 = vpop.permute.xlu0 %808
    %v811 = vsel %vm800, %v804, %v809
    %vm812 = vcmask 15360
    %813 = vst.msk [vmem:[%s8] sm:$0xff] %vm812, %v811
    // Predicated region
    $region42: #{latent_lstm_forward.1} parent=1 // pred_check
      _
    $region43: #{latent_lstm_forward.1} parent=1 // pred_check_branch
      %815 = sbr.rel (0) target = $region45
    $region44: #{latent_lstm_forward.1} parent=1 // pred_region
      _
    $region45: #{latent_lstm_forward.1} parent=1 // pred_fallthru
      _
    // Predicated region
    $region46: #{latent_lstm_forward.1} parent=1 // pred_check
      _
    $region47: #{latent_lstm_forward.1} parent=1 // pred_check_branch
      %817 = sbr.rel (0) target = $region49
    $region48: #{latent_lstm_forward.1} parent=1 // pred_region
      _
    $region49: #{latent_lstm_forward.1} parent=1 // pred_fallthru
      _
    %818 = vsyncpa [#allocation4], 1
    %819 = vsyncpa [#allocation6], 1

</llo_original>
